<compile_context>
chip_gen: v7x
topology: tpu7x:2x2x1
jax: 0.10.0
libtpu: 0.0.40
codegen_flags: <defaults>
</compile_context>

<pallas_src>
import math
import functools

import jax
import jax.numpy as jnp
from jax.experimental import pallas as pl
from jax.experimental.pallas import tpu as pltpu

EPS = 1e-3                  # self.eps
COS_EPS = math.cos(EPS)     # cos at the theta clip boundary; cos(pi-EPS) = -COS_EPS


def fraface_kernel(flag_ref, emb_ref, w_ref, lab_ref, rowp_ref, out_ref,
                   inv_cnorm_ref, *, s, tc, matmul_dtype):
    """One (tb, tc) tile of scaled_cosine_m.

    flag_ref:      (C//tc,) i32 SMEM  scalar-prefetch: 1 iff this class tile
                                      contains at least one label of the batch
    emb_ref:       (tb, E)  bf16      embeddings tile
    w_ref:         (E, tc)  f32       RAW class-weight tile (normalized here)
    lab_ref:       (tb, 1)  i32       labels for this batch tile
    rowp_ref:      (tb, 8)  f32       [cos_g, sin_g, lo_thr, hi_thr, g_add, 0, 0, 0]
    out_ref:       (tb, tc)           scaled logits tile
    inv_cnorm_ref: (1, tc)  f32 VMEM  cached per-column 1/||w|| (scratch)
    """
    j = pl.program_id(0)                 # class-tile index (outer grid axis)
    i = pl.program_id(1)                 # batch-tile index (inner grid axis)
    tb = out_ref.shape[0]

    w32 = w_ref[...]                     # f32 weight tile, read from HBM once

    # --- column l2-normalization from the f32 weights, cached per class tile
    @pl.when(i == 0)
    def _():
        inv_cnorm_ref[...] = jax.lax.rsqrt(
            jnp.sum(w32 * w32, axis=0, keepdims=True))        # (1, tc)

    # --- MXU matmul: bf16 operands cast in VMEM (never materialized in HBM),
    #     f32 accumulation, normalization folded into the result.
    cos = jnp.dot(emb_ref[...], w32.astype(matmul_dtype),
                  preferred_element_type=jnp.float32)
    cos = cos * inv_cnorm_ref[...]
    cos = jnp.clip(cos, -1.0 + EPS, 1.0 - EPS)

    flag = flag_ref[j]

    @pl.when(flag == 0)
    def _():
        # No label falls in this class tile: the margin path is the identity
        # (the theta clip is a no-op because cos is already clamped), so just
        # write the plain scaled cosine.
        out_ref[...] = (cos * s).astype(out_ref.dtype)

    @pl.when(flag != 0)
    def _():
        # --- per-row margin parameters (precomputed once in the wrapper) ----
        rp = rowp_ref[...]
        cos_g = rp[:, 0:1]
        sin_g = rp[:, 1:2]
        lo_thr = rp[:, 2:3]     # cos > lo_thr  <=>  theta + g < EPS
        hi_thr = rp[:, 3:4]     # cos < hi_thr  <=>  theta + g > pi - EPS
        g_add = rp[:, 4:5]

        # cos(theta + g) via the angle-addition identity; theta in [0, pi] so
        # sin(theta) = sqrt(1 - cos^2) >= 0.  Replaces full-tile acos + cos.
        sin_t = jnp.sqrt(jnp.maximum(1.0 - cos * cos, 0.0))
        cos_tm = cos * cos_g - sin_t * sin_g
        cos_tm = jnp.where(cos > lo_thr, COS_EPS, cos_tm)
        cos_tm = jnp.where(cos < hi_thr, -COS_EPS, cos_tm)
        margin_val = cos_tm - g_add

        # tile-local one-hot (replaces torch scatter_): compare a local iota
        # against (label - j*tc); margin only touches the label column.
        local_lab = lab_ref[...] - j * tc                      # (tb, 1)
        col_ids = jax.lax.broadcasted_iota(jnp.int32, (tb, tc), 1)
        onehot = local_lab == col_ids

        out_ref[...] = (jnp.where(onehot, margin_val, cos) * s).astype(out_ref.dtype)


def _default_tc(C, E, max_weight_tile_bytes=8 << 20):
    """Largest class-tile width (multiple of 256 preferred, >=128) dividing C
    whose double-buffered f32 weight tile fits the byte budget."""
    for cand in (4096, 2048, 1024, 512, 256, 128):
        if C % cand == 0 and 2 * E * cand * 4 <= max_weight_tile_bytes:
            return cand
    return C     # non-multiple-of-128 C: pad C (and the kernel) upstream if possible


def fraface_forward(embeddings, norms, label, kernel,
                    batch_mean, batch_std, classwise_mean,
                    *, m=0.4, h=0.333, s=64.0, t_alpha=1.0,
                    tb=None, tc=None,
                    matmul_dtype=jnp.bfloat16, out_dtype=jnp.bfloat16,
                    vmem_limit_bytes=None):
    """Returns (scaled_cosine_m, (new_batch_mean, new_batch_std, new_classwise_mean)).

    The PyTorch forward also builds a gradient-freezing hook from
    randperm / remove_common_elements; that is backward-only machinery with
    no effect on the forward output.
    # TODO(synk): gradient hook / freaze_idx mask has no Pallas (forward) equivalent.
    # TODO(synk): optional fp8 (v7x) / int8 (v5e/v6e) weight quantization would
    #             halve the dominant E*C HBM stream; needs accuracy validation.
    """
    B, E = embeddings.shape
    E2, C = kernel.shape
    assert E == E2
    if tb is None:
        tb = B                          # one batch tile -> weights read once
    if tc is None:
        tc = _default_tc(C, E)
    assert B % tb == 0 and C % tc == 0

    # --- glue: no_grad running-statistics block -----------------------------
    safe_norms = jnp.clip(norms.astype(jnp.float32), 0.001, 100.0)      # (B, 1)
    mean = jnp.mean(safe_norms)
    # torch .std() is unbiased (ddof=1); guard the degenerate B == 1 case.
    std = jnp.std(safe_norms, ddof=1) if B > 1 else jnp.float32(0.0)
    new_batch_mean = mean * t_alpha + (1.0 - t_alpha) * batch_mean
    new_batch_std = std * t_alpha + (1.0 - t_alpha) * batch_std

    counts = jnp.zeros((C,), jnp.float32).at[label].add(1.0)
    sums = jnp.zeros((C,), jnp.float32).at[label].add(safe_norms[:, 0])
    batch_group_mean = jnp.where(counts > 0, sums / jnp.maximum(counts, 1.0), 0.0)
    new_classwise_mean = jnp.where(
        counts > 0,
        batch_group_mean * t_alpha + (1.0 - t_alpha) * classwise_mean,
        classwise_mean)
    # NOTE: cw_margin_scaler / cw_cosine are computed but never used in the
    # PyTorch forward (dead code), so they are omitted here.

    # margin_scaler = clip(((safe_norms - batch_mean)/(batch_std+eps)) * h, -1, 1)
    margin_scaler = (safe_norms - new_batch_mean) / (new_batch_std + EPS)
    margin_scaler = jnp.clip(margin_scaler * h, -1.0, 1.0)              # (B, 1)

    # --- per-row margin trig, computed ONCE here (not per class tile) -------
    g_ang = -m * margin_scaler                                          # (B, 1)
    g_add = m + m * margin_scaler                                       # (B, 1)
    cos_g = jnp.cos(g_ang)
    sin_g = jnp.sin(g_ang)
    #   theta + g <  EPS      <=>  cos > cos(max(EPS - g, 0))
    #   theta + g >  pi - EPS <=>  cos < cos(min(pi - EPS - g, pi))
    lo_thr = jnp.cos(jnp.maximum(EPS - g_ang, 0.0))
    hi_thr = jnp.cos(jnp.minimum(math.pi - EPS - g_ang, math.pi))
    rowp = jnp.concatenate(
        [cos_g, sin_g, lo_thr, hi_thr, g_add, jnp.zeros((B, 3), jnp.float32)],
        axis=1).astype(jnp.float32)                                     # (B, 8)

    label_col = label.reshape(-1, 1).astype(jnp.int32)                  # (B, 1)

    # "class tile contains at least one label" flags -> SMEM scalar prefetch.
    n_ctiles = C // tc
    tile_flags = jnp.zeros((n_ctiles,), jnp.int32).at[label // tc].set(1)

    # Only the (tiny) embeddings are pre-cast to bf16 in the wrapper; the big
    # E*C weight matrix stays f32 in HBM and is cast to bf16 inside the kernel.
    emb_mm = embeddings.astype(matmul_dtype)
    kernel_f32 = kernel.astype(jnp.float32)
    out_itemsize = jnp.dtype(out_dtype).itemsize

    # Class axis OUTER, batch axis inner: the weight index_map (0, j) is
    # constant across the inner axis, so each (E, tc) weight tile is DMA'd
    # from HBM exactly once (per TensorCore).
    grid = (n_ctiles, B // tb)

    if vmem_limit_bytes is None:
        vmem_need = (2 * E * tc * 4                 # double-buffered f32 weight tile
                     + 2 * tb * tc * out_itemsize   # double-buffered output tile
                     + 2 * tb * E * 2               # embeddings tile
                     + 2 * tb * (4 + 8 * 4)         # labels + rowp tiles
                     + 8 * tc * 4)                  # inv_cnorm scratch (padded)
        # 32 MiB floor; 64 MiB ceiling so the limit stays within v7x physical VMEM.
        vmem_limit_bytes = int(min(max(2 * vmem_need, 32 << 20), 64 << 20))

    cost = pl.CostEstimate(
        flops=2 * B * E * C,
        # sqrt only on label-carrying tiles + one rsqrt per column
        transcendentals=tb * tc * min(B, n_ctiles) + C,
        bytes_accessed=int(E * C * 4 + B * C * out_itemsize + B * E * 2 + 48 * B))

    scaled = pl.pallas_call(
        functools.partial(fraface_kernel, s=float(s), tc=tc,
                          matmul_dtype=matmul_dtype),
        out_shape=jax.ShapeDtypeStruct((B, C), out_dtype),
        grid_spec=pltpu.PrefetchScalarGridSpec(
            num_scalar_prefetch=1,                  # tile_flags -> SMEM
            grid=grid,
            in_specs=[
                pl.BlockSpec((tb, E), lambda j, i, fl: (i, 0)),   # embeddings (bf16)
                pl.BlockSpec((E, tc), lambda j, i, fl: (0, j)),   # RAW f32 class weights
                pl.BlockSpec((tb, 1), lambda j, i, fl: (i, 0)),   # labels
                pl.BlockSpec((tb, 8), lambda j, i, fl: (i, 0)),   # per-row margin params
            ],
            out_specs=pl.BlockSpec((tb, tc), lambda j, i, fl: (i, j)),
            scratch_shapes=[pltpu.VMEM((1, tc), jnp.float32)],    # cached 1/||w||
        ),
        compiler_params=pltpu.CompilerParams(
            # class axis parallel (megacore splits classes), batch axis never
            # core-sharded -> each weight tile crosses HBM exactly once per core.
            dimension_semantics=("parallel", "arbitrary"),
            vmem_limit_bytes=vmem_limit_bytes),
        cost_estimate=cost,
    )(tile_flags, emb_mm, kernel_f32, label_col, rowp)

    return scaled, (new_batch_mean, new_batch_std, new_classwise_mean)


if __name__ == "__main__":
    # Small, module-consistent shapes: batch=8, embedding_size=32, classnum=512.
    B, E, C = 8, 32, 512
    m, h, s, t_alpha = 0.4, 0.333, 64.0, 1.0

    key = jax.random.PRNGKey(0)
    k1, k2, k3, k4 = jax.random.split(key, 4)

    emb = jax.random.normal(k1, (B, E), jnp.float32)
    emb = emb / jnp.linalg.norm(emb, axis=1, keepdims=True)      # unit embeddings
    norms = jax.random.uniform(k2, (B, 1), jnp.float32, 5.0, 40.0)
    # Deterministic labels chosen so class tile 2 (cols 256..383, tc=128) is
    # label-free: exercises both the gated and the plain kernel branches.
    label = jnp.array([3, 77, 130, 200, 5, 64, 9, 450], dtype=jnp.int32)
    # Parameter init (deterministic stand-in for uniform_/renorm_/mul_; the
    # forward column-normalizes anyway).
    kernel = jax.random.uniform(k4, (E, C), jnp.float32, -1.0, 1.0)

    # Registered buffers.
    batch_mean = jnp.float32(20.0)
    batch_std = jnp.float32(10.0)
    classwise_mean = jnp.ones((C,), jnp.float32) * 20.0

    # ---- Pure-JAX reference of the forward math (acos/cos path; same bf16
    #      matmul-operand rounding and f32 column norms as the kernel). -------
    emb_q = emb.astype(jnp.bfloat16).astype(jnp.float32)
    w_q = kernel.astype(jnp.bfloat16).astype(jnp.float32)
    inv = jax.lax.rsqrt(jnp.sum(kernel * kernel, axis=0, keepdims=True))   # f32 norms
    cosine = jnp.clip((emb_q @ w_q) * inv, -1.0 + EPS, 1.0 - EPS)
    safe_norms = jnp.clip(norms, 0.001, 100.0)
    bm = jnp.mean(safe_norms)
    bs = jnp.std(safe_norms, ddof=1)
    ms = jnp.clip((safe_norms - bm) / (bs + EPS) * h, -1.0, 1.0)
    onehot = jax.nn.one_hot(label, C, dtype=jnp.float32)
    theta_m = jnp.clip(jnp.arccos(cosine) + onehot * (-m * ms),
                       EPS, math.pi - EPS)
    ref = (jnp.cos(theta_m) - onehot * (m + m * ms)) * s

    # ---- Run 1: f32 logits, tight tolerance (validates the math). ----------
    out32, (nbm, nbs, ncm) = fraface_forward(
        emb, norms, label, kernel, batch_mean, batch_std, classwise_mean,
        m=m, h=h, s=s, t_alpha=t_alpha, tc=128, out_dtype=jnp.float32)
    out32 = jax.block_until_ready(out32)
    assert out32.shape == (B, C)
    err32 = float(jnp.max(jnp.abs(out32 - ref)))
    assert jnp.allclose(out32, ref, atol=5e-2, rtol=1e-2), err32

    # ---- Run 2: default bf16 logits (halves the writeback stream). ---------
    outbf, _ = fraface_forward(
        emb, norms, label, kernel, batch_mean, batch_std, classwise_mean,
        m=m, h=h, s=s, t_alpha=t_alpha, tc=128)                 # out_dtype=bf16
    outbf = jax.block_until_ready(outbf)
    assert outbf.dtype == jnp.bfloat16
    errbf = float(jnp.max(jnp.abs(outbf.astype(jnp.float32) - ref)))
    assert jnp.allclose(outbf.astype(jnp.float32), ref, atol=0.5, rtol=1e-2), errbf

    # Running-buffer glue sanity (t_alpha == 1 -> buffers == batch stats).
    assert jnp.allclose(nbm, bm) and jnp.allclose(nbs, bs)

    print("KERNEL_OK")
</pallas_src>

<mosaic_0001>
module attributes {stable_mosaic.version = 11 : i64} {
  func.func @fraface_kernel(%arg0: i32, %arg1: i32, %arg2: memref<4xi32, #tpu.memory_space<smem>>, %arg3: memref<8x32xbf16, #tpu.memory_space<vmem>>, %arg4: memref<32x128xf32, #tpu.memory_space<vmem>>, %arg5: memref<8x1xi32, #tpu.memory_space<vmem>>, %arg6: memref<8x8xf32, #tpu.memory_space<vmem>>, %arg7: memref<8x128xf32, #tpu.memory_space<vmem>>, %arg8: memref<1x128xf32, #tpu.memory_space<vmem>>) attributes {dimension_semantics = [#tpu.dimension_semantics<parallel>, #tpu.dimension_semantics<arbitrary>], iteration_bounds = array<i64: 4, 1>, scalar_prefetch = 1 : i64, scratch_operands = 1 : i64, tpu.core_type = #tpu.core_type<tc>, window_params = [{transform_indices = @transform_0, window_bounds = array<i64: 8, 32>}, {transform_indices = @transform_1, window_bounds = array<i64: 32, 128>}, {transform_indices = @transform_2, window_bounds = array<i64: 8, 1>}, {transform_indices = @transform_3, window_bounds = array<i64: 8, 8>}, {transform_indices = @transform_4, window_bounds = array<i64: 8, 128>}]} {
    %c0 = arith.constant 0 : index
    %c0_0 = arith.constant 0 : index
    %0 = vector.load %arg4[%c0, %c0_0] : memref<32x128xf32, #tpu.memory_space<vmem>>, vector<32x128xf32>
    %c0_i32 = arith.constant 0 : i32
    %1 = arith.cmpi eq, %arg1, %c0_i32 : i32
    %2 = arith.extui %1 : i1 to i32
    %c0_i32_1 = arith.constant 0 : i32
    %3 = arith.cmpi ne, %2, %c0_i32_1 : i32
    scf.if %3 {
      %22 = arith.mulf %0, %0 : vector<32x128xf32>
      %cst_12 = arith.constant dense<0.000000e+00> : vector<128xf32>
      %23 = vector.multi_reduction <add>, %22, %cst_12 [0] : vector<32x128xf32> to vector<128xf32>
      %24 = vector.shape_cast %23 : vector<128xf32> to vector<1x128xf32>
      %25 = math.rsqrt %24 : vector<1x128xf32>
      %c0_13 = arith.constant 0 : index
      %c0_14 = arith.constant 0 : index
      %26 = vector.load %arg8[%c0_13, %c0_14] : memref<1x128xf32, #tpu.memory_space<vmem>>, vector<1x128xf32>
      tpu.vector_store %arg8[%c0_13, %c0_14], %25 {strides = array<i32>} : memref<1x128xf32, #tpu.memory_space<vmem>>, vector<1x128xf32>,
    } else {
    }
    %c0_2 = arith.constant 0 : index
    %c0_3 = arith.constant 0 : index
    %4 = vector.load %arg3[%c0_2, %c0_3] : memref<8x32xbf16, #tpu.memory_space<vmem>>, vector<8x32xbf16>
    %5 = arith.truncf %0 : vector<32x128xf32> to vector<32x128xbf16>
    %cst = arith.constant dense<0.000000e+00> : vector<8x128xf32>
    %6 = tpu.matmul %4, %5, %cst {dimension_numbers = #tpu.dot_dimension_numbers<[1], [0], [0], [1], [0, 0, 1, 1], [], []>} : vector<8x32xbf16>, vector<32x128xbf16>, vector<8x128xf32> -> vector<8x128xf32>
    %c0_4 = arith.constant 0 : index
    %c0_5 = arith.constant 0 : index
    %7 = vector.load %arg8[%c0_4, %c0_5] : memref<1x128xf32, #tpu.memory_space<vmem>>, vector<1x128xf32>
    %8 = vector.broadcast %7 : vector<1x128xf32> to vector<8x128xf32>
    %9 = arith.mulf %6, %8 : vector<8x128xf32>
    %cst_6 = arith.constant -9.990000e-01 : f32
    %cst_7 = arith.constant 9.990000e-01 : f32
    %10 = vector.broadcast %cst_6 : f32 to vector<8x128xf32>
    %11 = arith.maximumf %10, %9 : vector<8x128xf32>
    %12 = vector.broadcast %cst_7 : f32 to vector<8x128xf32>
    %13 = arith.minimumf %12, %11 : vector<8x128xf32>
    %14 = arith.index_cast %arg0 : i32 to index
    %15 = memref.load %arg2[%14] : memref<4xi32, #tpu.memory_space<smem>>
    %c0_i32_8 = arith.constant 0 : i32
    %16 = arith.cmpi eq, %15, %c0_i32_8 : i32
    %17 = arith.extui %16 : i1 to i32
    %c0_i32_9 = arith.constant 0 : i32
    %18 = arith.cmpi ne, %17, %c0_i32_9 : i32
    scf.if %18 {
      %cst_12 = arith.constant 6.400000e+01 : f32
      %22 = vector.broadcast %cst_12 : f32 to vector<8x128xf32>
      %23 = arith.mulf %13, %22 : vector<8x128xf32>
      %c0_13 = arith.constant 0 : index
      %c0_14 = arith.constant 0 : index
      %24 = vector.load %arg7[%c0_13, %c0_14] : memref<8x128xf32, #tpu.memory_space<vmem>>, vector<8x128xf32>
      tpu.vector_store %arg7[%c0_13, %c0_14], %23 {strides = array<i32>} : memref<8x128xf32, #tpu.memory_space<vmem>>, vector<8x128xf32>,
    } else {
    }
    %c0_i32_10 = arith.constant 0 : i32
    %19 = arith.cmpi ne, %15, %c0_i32_10 : i32
    %20 = arith.extui %19 : i1 to i32
    %c0_i32_11 = arith.constant 0 : i32
    %21 = arith.cmpi ne, %20, %c0_i32_11 : i32
    scf.if %21 {
      %c0_12 = arith.constant 0 : index
      %c0_13 = arith.constant 0 : index
      %22 = vector.load %arg6[%c0_12, %c0_13] : memref<8x8xf32, #tpu.memory_space<vmem>>, vector<8x8xf32>
      %23 = vector.extract_strided_slice %22 {offsets = [0, 0], sizes = [8, 1], strides = [1, 1]} : vector<8x8xf32> to vector<8x1xf32>
      %24 = vector.extract_strided_slice %22 {offsets = [0, 1], sizes = [8, 1], strides = [1, 1]} : vector<8x8xf32> to vector<8x1xf32>
      %25 = vector.extract_strided_slice %22 {offsets = [0, 2], sizes = [8, 1], strides = [1, 1]} : vector<8x8xf32> to vector<8x1xf32>
      %26 = vector.extract_strided_slice %22 {offsets = [0, 3], sizes = [8, 1], strides = [1, 1]} : vector<8x8xf32> to vector<8x1xf32>
      %27 = vector.extract_strided_slice %22 {offsets = [0, 4], sizes = [8, 1], strides = [1, 1]} : vector<8x8xf32> to vector<8x1xf32>
      %28 = arith.mulf %13, %13 : vector<8x128xf32>
      %cst_14 = arith.constant 1.000000e+00 : f32
      %29 = vector.broadcast %cst_14 : f32 to vector<8x128xf32>
      %30 = arith.subf %29, %28 : vector<8x128xf32>
      %cst_15 = arith.constant 0.000000e+00 : f32
      %31 = vector.broadcast %cst_15 : f32 to vector<8x128xf32>
      %32 = arith.maximumf %30, %31 : vector<8x128xf32>
      %33 = math.sqrt %32 : vector<8x128xf32>
      %34 = vector.broadcast %23 : vector<8x1xf32> to vector<8x128xf32>
      %35 = arith.mulf %13, %34 : vector<8x128xf32>
      %36 = vector.broadcast %24 : vector<8x1xf32> to vector<8x128xf32>
      %37 = arith.mulf %33, %36 : vector<8x128xf32>
      %38 = arith.subf %35, %37 : vector<8x128xf32>
      %39 = vector.broadcast %25 : vector<8x1xf32> to vector<8x128xf32>
      %40 = arith.cmpf ogt, %13, %39 : vector<8x128xf32>
      %cst_16 = arith.constant 0.999999523 : f32
      %41 = vector.broadcast %cst_16 : f32 to vector<8x128xf32>
      %42 = arith.select %40, %41, %38 : vector<8x128xi1>, vector<8x128xf32>
      %43 = vector.broadcast %26 : vector<8x1xf32> to vector<8x128xf32>
      %44 = arith.cmpf olt, %13, %43 : vector<8x128xf32>
      %cst_17 = arith.constant -0.999999523 : f32
      %45 = vector.broadcast %cst_17 : f32 to vector<8x128xf32>
      %46 = arith.select %44, %45, %42 : vector<8x128xi1>, vector<8x128xf32>
      %47 = vector.broadcast %27 : vector<8x1xf32> to vector<8x128xf32>
      %48 = arith.subf %46, %47 : vector<8x128xf32>
      %c0_18 = arith.constant 0 : index
      %c0_19 = arith.constant 0 : index
      %49 = vector.load %arg5[%c0_18, %c0_19] : memref<8x1xi32, #tpu.memory_space<vmem>>, vector<8x1xi32>
      %c128_i32 = arith.constant 128 : i32
      %50 = arith.muli %arg0, %c128_i32 : i32
      %51 = vector.broadcast %50 : i32 to vector<8x1xi32>
      %52 = arith.subi %49, %51 : vector<8x1xi32>
      %53 = tpu.iota {dimensions = array<i32: 1>} : vector<8x128xi32>
      %54 = vector.broadcast %52 : vector<8x1xi32> to vector<8x128xi32>
      %55 = arith.cmpi eq, %54, %53 : vector<8x128xi32>
      %56 = arith.select %55, %48, %13 : vector<8x128xi1>, vector<8x128xf32>
      %cst_20 = arith.constant 6.400000e+01 : f32
      %57 = vector.broadcast %cst_20 : f32 to vector<8x128xf32>
      %58 = arith.mulf %56, %57 : vector<8x128xf32>
      %c0_21 = arith.constant 0 : index
      %c0_22 = arith.constant 0 : index
      %59 = vector.load %arg7[%c0_21, %c0_22] : memref<8x128xf32, #tpu.memory_space<vmem>>, vector<8x128xf32>
      tpu.vector_store %arg7[%c0_21, %c0_22], %58 {strides = array<i32>} : memref<8x128xf32, #tpu.memory_space<vmem>>, vector<8x128xf32>,
    } else {
    }
    return
  }
  func.func @transform_0(%arg0: i32, %arg1: i32, %arg2: memref<4xi32, #tpu.memory_space<smem>>) -> (i32, i32) {
    %c0_i32 = arith.constant 0 : i32
    %c0_i32_0 = arith.constant 0 : i32
    return %arg1, %c0_i32 : i32, i32
  }
  func.func @transform_1(%arg0: i32, %arg1: i32, %arg2: memref<4xi32, #tpu.memory_space<smem>>) -> (i32, i32) {
    %c0_i32 = arith.constant 0 : i32
    %c0_i32_0 = arith.constant 0 : i32
    return %c0_i32, %arg0 : i32, i32
  }
  func.func @transform_2(%arg0: i32, %arg1: i32, %arg2: memref<4xi32, #tpu.memory_space<smem>>) -> (i32, i32) {
    %c0_i32 = arith.constant 0 : i32
    %c0_i32_0 = arith.constant 0 : i32
    return %arg1, %c0_i32 : i32, i32
  }
  func.func @transform_3(%arg0: i32, %arg1: i32, %arg2: memref<4xi32, #tpu.memory_space<smem>>) -> (i32, i32) {
    %c0_i32 = arith.constant 0 : i32
    %c0_i32_0 = arith.constant 0 : i32
    return %arg1, %c0_i32 : i32, i32
  }
  func.func @transform_4(%arg0: i32, %arg1: i32, %arg2: memref<4xi32, #tpu.memory_space<smem>>) -> (i32, i32) {
    %c0_i32 = arith.constant 0 : i32
    return %arg1, %arg0 : i32, i32
  }
}

</mosaic_0001>

<llo_original>
// kernel: tpu_custom_call.1
$region0: #{tpu_custom_call.1}
  #allocation0 [shape = 'u32[]', space=smem, size = 0x4, offset = 0x4, fixed_abs, tag = 'smem constant byte address 0x4 - core index']
  #allocation1 [shape = 'u32[144,128]{1,0:T(1,128)}', space=vmem, size = 0x12000, scoped, tag = 'internal scratch']
  #allocation2 [shape = 'f32[1,128]{1,0:T(1,128)}', space=vmem, size = 0x200, scoped, tag = 'scratch operand']
  #allocation3 [shape = 's32[1]{0}', space=sflag, size = 0x4, scoped, tag = 'scoped memory for tpu_custom_call.1']
  #allocation4 [shape = 'u8[512]{0}', space=smem, size = 0x200, scoped, tag = 'prefetched SMEM operand 0']
  %s0 = inlined_call_operand.vmem [shape: s32[4], index: 0, kind: input, shape index: {}]
  %s1 = inlined_call_operand.vmem [shape: bf16[8,32], index: 1, kind: input, shape index: {}]
  %s2 = inlined_call_operand.hbm [shape: f32[32,512], index: 2, kind: input, shape index: {}]
  %s3 = inlined_call_operand.vmem [shape: s32[8,1], index: 3, kind: input, shape index: {}]
  %s4 = inlined_call_operand.vmem [shape: f32[8,8], index: 4, kind: input, shape index: {}]
  %s5 = inlined_call_operand.hbm [shape: f32[8,512], index: 5, kind: output, shape index: {}]
  %s6 = sld [smem:[#allocation0]]
  $region65: #{tpu_custom_call.1} parent=0
    _
  %s8 = ssub.s32 1, %s6
  %s9 = scalar_select 0, %s8, %s6
  %s10 = sshll.u32 %s0, 4
  %s11 = int_to_ptr.vmem [resolvable:$true] %s10
  %13 = dma.vmem_to_smem %s11, 16, [#allocation4], [#allocation3]
  %14 = dma.done [#allocation3], 16
  %15 = sfence
  $region1: #{tpu_custom_call.1} parent=0
    #allocation5 [shape = 'u8[32768]{0}', space=vmem, size = 0x8000, scoped, tag = 'input window, operand 2']
    #allocation6 [shape = 's32[2]{0}', space=sflag, size = 0x8, scoped, tag = 'scoped memory for tpu_custom_call.1']
    #allocation7 [shape = 's32[2]{0}', space=sflag, size = 0x8, scoped, tag = 'scoped memory for tpu_custom_call.1']
    #allocation8 [shape = 'u8[8192]{0}', space=vmem, size = 0x2000, scoped, tag = 'output window, operand 0']
    %16 = vsyncpa [#allocation6], 0
    %s17 = scalar_lea.sflag [#allocation6], 1
    %18 = vsyncpa %s17, 0
    %19 = vsyncpa [#allocation7], 0
    %s20 = scalar_lea.sflag [#allocation7], 1
    %21 = vsyncpa %s20, 0
    loop: start=0, step=1, limit=6
    $region2: #{tpu_custom_call.1} parent=1 // loop_pre_header
      _
    $region3: #{tpu_custom_call.1} parent=1 // loop_header
      %s23 = sphi 0, %s27
      %p24 = scmp.ge.s32.totalorder %s23, 6
      %s30 = sphi 0, %s42
      %s31 = sphi 0, %s38
      %s32 = sphi 0, %s30
      %s33 = sphi 0, %s31
      %s34 = sphi 0, %s32
      %s35 = sphi 0, %s33
      %s45 = sphi 0, %s47
      %s48 = sphi 0, %s45
      %s49 = sphi 0, %s48
      %s65 = sphi 0, %s49
      %s71 = sphi 0, %s73
      %s74 = sphi 0, %s71
      %s75 = sphi 0, %s74
      %s91 = sphi 0, %s75
      %s97 = sphi 0, %s99
      %s100 = sphi 0, %s97
      %s101 = sphi 0, %s100
      %s117 = sphi 0, %s101
      %s123 = sphi 0, %s125
      %s126 = sphi 0, %s123
      %s127 = sphi 0, %s126
      %s143 = sphi 0, %s127
      %s151 = sphi 0, %s153
      %s154 = sphi 0, %s151
      %s155 = sphi 0, %s154
      %s171 = sphi 0, %s155
    $region4: #{tpu_custom_call.1} parent=1 // loop_header_branch
      %26 = sbr.rel (%p24) target = $region8
    $region5: #{tpu_custom_call.1} parent=1 // loop_body
      %s28 = ssub.s32 %s23, 1
      %s29 = ssub.s32 %s23, 2
      %s36 = sadd.s32 1, %s31
      %p37 = scmp.ge.s32.totalorder %s36, 1
      %s38 = scalar_select %p37, 0, %s36
      %s39 = sadd.s32 1, %s30
      %s40 = scalar_select %p37, %s39, %s30
      %p41 = scmp.ge.s32.totalorder %s40, 4
      %s42 = scalar_select %p41, 0, %s40
      %s43 = ssub.s32 %s31, %s38
      %p44 = scmp.eq.s32.totalorder %s43, 0
      %s46 = sadd.s32 %s45, 1
      %s47 = scalar_select %p44, %s45, %s46
      %p50 = pneg %p44
      %p51 = scmp.eq.s32.totalorder %s23, 3
      %p52 = por %p50, %p51
      %p53 = scmp.ne.s32.totalorder %s45, %s48
      %p54 = scmp.eq.s32.totalorder %s23, 0
      %p55 = por %p53, %p54
      %p56 = scmp.ne.s32.totalorder %s45, %s48
      %p57 = scmp.eq.s32.totalorder %s28, 3
      %p58 = por %p56, %p57
      %p59 = scmp.ne.s32.totalorder %s48, %s49
      %p60 = scmp.eq.s32.totalorder %s28, 0
      %p61 = por %p59, %p60
      %p62 = scmp.ne.s32.totalorder %s48, %s49
      %p63 = scmp.eq.s32.totalorder %s29, 3
      %p64 = por %p62, %p63
      %p66 = scmp.ne.s32.totalorder %s49, %s65
      %p67 = scmp.eq.s32.totalorder %s29, 0
      %p68 = por %p66, %p67
      %s69 = ssub.s32 %s30, %s42
      %p70 = scmp.eq.s32.totalorder %s69, 0
      %s72 = sadd.s32 %s71, 1
      %s73 = scalar_select %p70, %s71, %s72
      %p76 = pneg %p70
      %p77 = scmp.eq.s32.totalorder %s23, 3
      %p78 = por %p76, %p77
      %p79 = scmp.ne.s32.totalorder %s71, %s74
      %p80 = scmp.eq.s32.totalorder %s23, 0
      %p81 = por %p79, %p80
      %p82 = scmp.ne.s32.totalorder %s71, %s74
      %p83 = scmp.eq.s32.totalorder %s28, 3
      %p84 = por %p82, %p83
      %p85 = scmp.ne.s32.totalorder %s74, %s75
      %p86 = scmp.eq.s32.totalorder %s28, 0
      %p87 = por %p85, %p86
      %p88 = scmp.ne.s32.totalorder %s74, %s75
      %p89 = scmp.eq.s32.totalorder %s29, 3
      %p90 = por %p88, %p89
      %p92 = scmp.ne.s32.totalorder %s75, %s91
      %p93 = scmp.eq.s32.totalorder %s29, 0
      %p94 = por %p92, %p93
      %s95 = ssub.s32 %s31, %s38
      %p96 = scmp.eq.s32.totalorder %s95, 0
      %s98 = sadd.s32 %s97, 1
      %s99 = scalar_select %p96, %s97, %s98
      %p102 = pneg %p96
      %p103 = scmp.eq.s32.totalorder %s23, 3
      %p104 = por %p102, %p103
      %p105 = scmp.ne.s32.totalorder %s97, %s100
      %p106 = scmp.eq.s32.totalorder %s23, 0
      %p107 = por %p105, %p106
      %p108 = scmp.ne.s32.totalorder %s97, %s100
      %p109 = scmp.eq.s32.totalorder %s28, 3
      %p110 = por %p108, %p109
      %p111 = scmp.ne.s32.totalorder %s100, %s101
      %p112 = scmp.eq.s32.totalorder %s28, 0
      %p113 = por %p111, %p112
      %p114 = scmp.ne.s32.totalorder %s100, %s101
      %p115 = scmp.eq.s32.totalorder %s29, 3
      %p116 = por %p114, %p115
      %p118 = scmp.ne.s32.totalorder %s101, %s117
      %p119 = scmp.eq.s32.totalorder %s29, 0
      %p120 = por %p118, %p119
      %s121 = ssub.s32 %s31, %s38
      %p122 = scmp.eq.s32.totalorder %s121, 0
      %s124 = sadd.s32 %s123, 1
      %s125 = scalar_select %p122, %s123, %s124
      %p128 = pneg %p122
      %p129 = scmp.eq.s32.totalorder %s23, 3
      %p130 = por %p128, %p129
      %p131 = scmp.ne.s32.totalorder %s123, %s126
      %p132 = scmp.eq.s32.totalorder %s23, 0
      %p133 = por %p131, %p132
      %p134 = scmp.ne.s32.totalorder %s123, %s126
      %p135 = scmp.eq.s32.totalorder %s28, 3
      %p136 = por %p134, %p135
      %p137 = scmp.ne.s32.totalorder %s126, %s127
      %p138 = scmp.eq.s32.totalorder %s28, 0
      %p139 = por %p137, %p138
      %p140 = scmp.ne.s32.totalorder %s126, %s127
      %p141 = scmp.eq.s32.totalorder %s29, 3
      %p142 = por %p140, %p141
      %p144 = scmp.ne.s32.totalorder %s127, %s143
      %p145 = scmp.eq.s32.totalorder %s29, 0
      %p146 = por %p144, %p145
      %s147 = ssub.s32 %s31, %s38
      %s148 = ssub.s32 %s30, %s42
      %s149 = sor.u32 %s147, %s148
      %p150 = scmp.eq.s32.totalorder %s149, 0
      %s152 = sadd.s32 %s151, 1
      %s153 = scalar_select %p150, %s151, %s152
      %p156 = pneg %p150
      %p157 = scmp.eq.s32.totalorder %s23, 3
      %p158 = por %p156, %p157
      %p159 = scmp.ne.s32.totalorder %s151, %s154
      %p160 = scmp.eq.s32.totalorder %s23, 0
      %p161 = por %p159, %p160
      %p162 = scmp.ne.s32.totalorder %s151, %s154
      %p163 = scmp.eq.s32.totalorder %s28, 3
      %p164 = por %p162, %p163
      %p165 = scmp.ne.s32.totalorder %s154, %s155
      %p166 = scmp.eq.s32.totalorder %s28, 0
      %p167 = por %p165, %p166
      %p168 = scmp.ne.s32.totalorder %s154, %s155
      %p169 = scmp.eq.s32.totalorder %s29, 3
      %p170 = por %p168, %p169
      %p172 = scmp.ne.s32.totalorder %s155, %s171
      %p173 = scmp.eq.s32.totalorder %s29, 0
      %p174 = por %p172, %p173
      %p175 = scmp.le.s32.totalorder 1, %s23
      %p176 = scmp.lt.s32.totalorder %s23, 5
      %p177 = pnand %p175, %p176
      %p178 = pneg %p177
      // Predicated region
      $region9: #{tpu_custom_call.1} parent=5 // pred_check
        _
      $region10: #{tpu_custom_call.1} parent=5 // pred_check_branch
        %180 = sbr.rel (%p177) target = $region12
      $region11: #{tpu_custom_call.1} parent=5 // pred_region
        %s181 = ssub.s32 %s23, 1
        // Predicated region
        $region13: #{tpu_custom_call.1} parent=11 // pred_check
          %p182 = pneg %p61
        $region14: #{tpu_custom_call.1} parent=11 // pred_check_branch
          %184 = sbr.rel (%p182) target = $region16
        $region15: #{tpu_custom_call.1} parent=11 // pred_region
          %p185 = scmp.lt.s32.totalorder %s33, 0
          %s186 = scalar_select %p185, %s33, 0
          %s187 = smul.addr %s186, 4
          %s188 = scalar_lea.vmem %s1, %s187
        $region16: #{tpu_custom_call.1} parent=11 // pred_fallthru
          _
        // Predicated region
        $region17: #{tpu_custom_call.1} parent=11 // pred_check
          %p189 = pneg %p113
        $region18: #{tpu_custom_call.1} parent=11 // pred_check_branch
          %191 = sbr.rel (%p189) target = $region20
        $region19: #{tpu_custom_call.1} parent=11 // pred_region
          %p192 = scmp.lt.s32.totalorder %s33, 0
          %s193 = scalar_select %p192, %s33, 0
          %s194 = smul.addr %s193, 8
          %s195 = scalar_lea.vmem %s3, %s194
        $region20: #{tpu_custom_call.1} parent=11 // pred_fallthru
          _
        // Predicated region
        $region21: #{tpu_custom_call.1} parent=11 // pred_check
          %p196 = pneg %p139
        $region22: #{tpu_custom_call.1} parent=11 // pred_check_branch
          %198 = sbr.rel (%p196) target = $region24
        $region23: #{tpu_custom_call.1} parent=11 // pred_region
          %p199 = scmp.lt.s32.totalorder %s33, 0
          %s200 = scalar_select %p199, %s33, 0
          %s201 = smul.addr %s200, 8
          %s202 = scalar_lea.vmem %s4, %s201
        $region24: #{tpu_custom_call.1} parent=11 // pred_fallthru
          _
      $region12: #{tpu_custom_call.1} parent=5 // pred_fallthru
        _
      %p203 = scmp.lt.s32.totalorder %s23, 4
      // Predicated region
      $region25: #{tpu_custom_call.1} parent=5 // pred_check
        %p204 = pneg %p203
      $region26: #{tpu_custom_call.1} parent=5 // pred_check_branch
        %206 = sbr.rel (%p204) target = $region28
      $region27: #{tpu_custom_call.1} parent=5 // pred_region
        // Predicated region
        $region29: #{tpu_custom_call.1} parent=27 // pred_check
          %p207 = pneg %p81
        $region30: #{tpu_custom_call.1} parent=27 // pred_check_branch
          %209 = sbr.rel (%p207) target = $region32
        $region31: #{tpu_custom_call.1} parent=27 // pred_region
          %s210 = sand.u32 %s71, 1
          %s211 = scalar_lea.sflag [#allocation6], %s210
          %s212 = sand.u32 %s71, 1
          %s213 = smul.addr %s212, 32
          %s214 = scalar_lea.vmem [#allocation5], %s213
          %s216 = ssub.s32 512, 512
          %217 = vsyncadd %s211, %s216
          %s218 = smul.addr %s30, 128
          %s219 = scalar_lea.hbm %s2, %s218
          %s220 = sshll.u32 %s214, 4
          %s221 = int_to_ptr.vmem [resolvable:$true] %s220
          %226 = dma.hbm_to_vmem [thread:$0]  %s219, 512, %s221, %s211, 512, 128, 8
        $region32: #{tpu_custom_call.1} parent=27 // pred_fallthru
          _
      $region28: #{tpu_custom_call.1} parent=5 // pred_fallthru
        _
      %p227 = scmp.le.s32.totalorder 1, %s23
      %p228 = scmp.lt.s32.totalorder %s23, 5
      %p229 = pnand %p227, %p228
      %p230 = pneg %p229
      // Predicated region
      $region33: #{tpu_custom_call.1} parent=5 // pred_check
        _
      $region34: #{tpu_custom_call.1} parent=5 // pred_check_branch
        %232 = sbr.rel (%p229) target = $region36
      $region35: #{tpu_custom_call.1} parent=5 // pred_region
        %s233 = ssub.s32 %s23, 1
        %s234 = sand.u32 %s74, 1
        %s235 = scalar_lea.sflag [#allocation6], %s234
        %s236 = sand.u32 %s74, 1
        %s237 = smul.addr %s236, 32
        %s238 = scalar_lea.vmem [#allocation5], %s237
        // Predicated region
        $region37: #{tpu_custom_call.1} parent=35 // pred_check
          %p239 = pneg %p87
        $region38: #{tpu_custom_call.1} parent=35 // pred_check_branch
          %241 = sbr.rel (%p239) target = $region40
        $region39: #{tpu_custom_call.1} parent=35 // pred_region
          %242 = dma.done %s235, 512
        $region40: #{tpu_custom_call.1} parent=35 // pred_fallthru
          _
        %p243 = scmp.lt.s32.totalorder %s33, 0
        %s244 = scalar_select %p243, %s33, 0
        %s245 = smul.addr %s244, 4
        %s246 = scalar_lea.vmem %s1, %s245
        %p247 = pneg %p61
        %p248 = pneg %p58
        %s249 = sand.u32 %s74, 1
        %s250 = scalar_lea.sflag [#allocation6], %s249
        %s251 = sand.u32 %s74, 1
        %s252 = smul.addr %s251, 32
        %s253 = scalar_lea.vmem [#allocation5], %s252
        %p254 = pneg %p87
        %p255 = pneg %p84
        %p256 = scmp.lt.s32.totalorder %s33, 0
        %s257 = scalar_select %p256, %s33, 0
        %s258 = smul.addr %s257, 8
        %s259 = scalar_lea.vmem %s3, %s258
        %p260 = pneg %p113
        %p261 = pneg %p110
        %p262 = scmp.lt.s32.totalorder %s33, 0
        %s263 = scalar_select %p262, %s33, 0
        %s264 = smul.addr %s263, 8
        %s265 = scalar_lea.vmem %s4, %s264
        %p266 = pneg %p139
        %p267 = pneg %p136
        %p268 = pneg %p167
        %p269 = pneg %p164
        %s270 = sand.u32 %s154, 1
        %s271 = scalar_lea.sflag [#allocation7], %s270
        %s272 = sand.u32 %s154, 1
        %s273 = smul.addr %s272, 8
        %s274 = scalar_lea.vmem [#allocation8], %s273
        %p275 = scmp.lt.s32.totalorder %s33, 0
        %s276 = scalar_select %p275, %s33, 0
        %s277 = smul.addr %s276, 4
        %s278 = scalar_lea.vmem %s1, %s277
        %p279 = scmp.lt.s32.totalorder %s33, 0
        %s280 = scalar_select %p279, %s33, 0
        %s281 = smul.addr %s280, 8
        %s282 = scalar_lea.vmem %s3, %s281
        %p283 = scmp.lt.s32.totalorder %s33, 0
        %s284 = scalar_select %p283, %s33, 0
        %s285 = smul.addr %s284, 8
        %s286 = scalar_lea.vmem %s4, %s285
        %v288 = vld [vmem:[%s238] sm:$0xff]
        %v289 = vld [vmem:[%s238 + $0x8] sm:$0xff]
        %v290 = vld [vmem:[%s238 + $0x10] sm:$0xff]
        %v291 = vld [vmem:[%s238 + $0x18] sm:$0xff]
        %p292 = scmp.eq.s32.totalorder %s33, 0
        // Predicated region
        $region41: #{tpu_custom_call.1} parent=35 // pred_check
          %p293 = pneg %p292
        $region42: #{tpu_custom_call.1} parent=35 // pred_check_branch
          %295 = sbr.rel (%p293) target = $region44
        $region43: #{tpu_custom_call.1} parent=35 // pred_region
          %v296 = vmul.f32 %v288, %v288
          %v297 = vmul.f32 %v289, %v289
          %v298 = vmul.f32 %v290, %v290
          %v299 = vmul.f32 %v291, %v291
          %v300 = vadd.f32 %v296, %v297
          %v301 = vadd.f32 %v300, %v298
          %v302 = vadd.f32 %v301, %v299
          %v303 = vrot.slane %v302, 4
          %v304 = vadd.f32 %v302, %v303
          %v305 = vrot.slane %v304, 2
          %v306 = vadd.f32 %v304, %v305
          %v307 = vrot.slane %v306, 1
          %v308 = vadd.f32 %v306, %v307
          %v309 = vrsqrt.pop %v308
          %310 = vst [vmem:[#allocation2] sm:$0x1] %v309
        $region44: #{tpu_custom_call.1} parent=35 // pred_fallthru
          _
        %v311 = vld [vmem:[%s278] sm:$0xf]
        %v312 = vpack.c.bf16 %v289, %v288
        %v313 = vpack.c.bf16 %v291, %v290
        %vm314 = vcmask 261120
        %v316 = vsel %vm314, %v311, 0
        %318 = vmatprep.subr.bf16.mxu0 0
        %319 = vmatpush1.bf16.msra.mxu0 %v312
        %320 = vmatprep.subr.bf16.mxu0 0
        %321 = vmatpush1.bf16.msra.mxu0 %v313
        %322 = vmatprep.subr.bf16.mxu0 0
        %323 = vmatpush1.bf16.msra.mxu0 0
        %324 = vmatprep.subr.bf16.mxu0 0
        %325 = vmatpush1.bf16.msra.mxu0 0
        %326 = vmatprep.subr.bf16.mxu0 0
        %327 = vmatpush1.bf16.msra.mxu0 0
        %328 = vmatprep.subr.bf16.mxu0 0
        %329 = vmatpush1.bf16.msra.mxu0 0
        %330 = vmatprep.subr.bf16.mxu0 0
        %331 = vmatpush1.bf16.msra.mxu0 0
        %332 = vmatprep.subr.bf16.mxu0 0
        %333 = vmatpush1.bf16.msra.mxu0 0
        %334 = vmatprep.subr.bf16.mxu0 0
        %335 = vmatpush1.bf16.msra.mxu0 0
        %336 = vmatprep.subr.bf16.mxu0 0
        %337 = vmatpush1.bf16.msra.mxu0 0
        %338 = vmatprep.subr.bf16.mxu0 0
        %339 = vmatpush1.bf16.msra.mxu0 0
        %340 = vmatprep.subr.bf16.mxu0 0
        %341 = vmatpush1.bf16.msra.mxu0 0
        %342 = vmatprep.subr.bf16.mxu0 0
        %343 = vmatpush1.bf16.msra.mxu0 0
        %344 = vmatprep.subr.bf16.mxu0 0
        %345 = vmatpush1.bf16.msra.mxu0 0
        %346 = vmatprep.subr.bf16.mxu0 0
        %347 = vmatpush1.bf16.msra.mxu0 0
        %348 = vmatprep.subr.bf16.mxu0 0
        %349 = vmatpush1.bf16.msra.mxu0 0
        %350 = vmatprep.mubr.bf16.mxu0 0
        %351 = vmatmul.mubr.bf16.gmra.mrb[0].mxu0 %v316
        %v352 = vpop.f32.mrb[0].mxu0
        %v353 = vadd.f32 0.0, %v352
        %v354 = vpop.f32.mrb[0].mxu0
        %v355 = vpop.f32.mrb[0].mxu0
        %v356 = vpop.f32.mrb[0].mxu0
        %357 = vdwg.mxu0
        %v358 = vld [vmem:[#allocation2] sm:$0x1]
        %v360 = vlaneseq
        %v361 = vshrl.u32 %v360, 7
        %v362 = vsub.s32 0, %v361
        %v363 = vrot.slane %v358, %v362
        %v365 = vmul.f32 %v353, %v363
        %v366 = vmax.f32 %v365, -0.999
        %v367 = vmin.f32 %v366, 0.999
        %s368 = sld [smem:[#allocation4 + %s32]]
        %p369 = scmp.eq.s32.totalorder %s368, 0
        // Predicated region
        $region45: #{tpu_custom_call.1} parent=35 // pred_check
          %p370 = pneg %p369
        $region46: #{tpu_custom_call.1} parent=35 // pred_check_branch
          %372 = sbr.rel (%p370) target = $region48
        $region47: #{tpu_custom_call.1} parent=35 // pred_region
          %v373 = vmul.f32 %v367, 64.0
          %374 = vst [vmem:[%s274] sm:$0xff] %v373
        $region48: #{tpu_custom_call.1} parent=35 // pred_fallthru
          _
        %p375 = scmp.ne.s32.totalorder %s368, 0
        // Predicated region
        $region49: #{tpu_custom_call.1} parent=35 // pred_check
          %p376 = pneg %p375
        $region50: #{tpu_custom_call.1} parent=35 // pred_check_branch
          %378 = sbr.rel (%p376) target = $region52
        $region51: #{tpu_custom_call.1} parent=35 // pred_region
          %v379 = vld [vmem:[%s286] sm:$0xff]
          %v380 = vmul.f32 %v367, %v367
          %v381 = vsub.f32 1.0, %v380
          %v382 = vmax.f32 %v381, 0.0
          %v383 = vrsqrt.pop %v382
          %v384 = vmul.f32 %v382, %v383
          %vm385 = vcmp.eq.f32.partialorder %v382, inf
          %v386 = vsel %vm385, %v382, %v384
          %vm387 = vcmp.eq.f32.partialorder %v382, 0.0
          %v388 = vand.u32 %v382, 2147483648
          %v389 = vsel %vm387, %v388, %v386
          %391 = vset.pattern.permute.xlu0 0
          %392 = vperm.xlu0 %391, %v379
          %v393 = vpop.permute.xlu0 %392
          %v395 = vmul.f32 %v367, %v393
          %396 = vset.pattern.permute.xlu0 1
          %397 = vperm.xlu0 %396, %v379
          %v398 = vpop.permute.xlu0 %397
          %v400 = vmul.f32 %v389, %v398
          %v401 = vsub.f32 %v395, %v400
          %402 = vset.pattern.permute.xlu0 2
          %403 = vperm.xlu0 %402, %v379
          %v404 = vpop.permute.xlu0 %403
          %vm406 = vcmp.gt.f32.partialorder %v367, %v404
          %v407 = vsel %vm406, 0.9999995, %v401
          %408 = vset.pattern.permute.xlu0 3
          %409 = vperm.xlu0 %408, %v379
          %v410 = vpop.permute.xlu0 %409
          %vm412 = vcmp.lt.f32.partialorder %v367, %v410
          %v413 = vsel %vm412, -0.9999995, %v407
          %414 = vset.pattern.permute.xlu0 4
          %415 = vperm.xlu0 %414, %v379
          %v416 = vpop.permute.xlu0 %415
          %v418 = vsub.f32 %v413, %v416
          %v419 = vld [vmem:[%s282] sm:$0xff]
          %s420 = smul.u32 %s32, 128
          %v421 = vstv %s420
          %v422 = vsub.s32 %v419, %v421
          %v423 = vlaneseq
          %v424 = vand.u32 %v423, 127
          %425 = vset.pattern.permute.xlu0 0
          %426 = vperm.xlu0 %425, %v422
          %v427 = vpop.permute.xlu0 %426
          %vm428 = vcmp.eq.s32.totalorder %v427, %v424
          %v429 = vsel %vm428, %v418, %v367
          %v430 = vmul.f32 %v429, 64.0
          %431 = vst [vmem:[%s274] sm:$0xff] %v430
        $region52: #{tpu_custom_call.1} parent=35 // pred_fallthru
          _
        %s432 = sand.u32 %s154, 1
        %s433 = scalar_lea.sflag [#allocation7], %s432
        %s434 = sand.u32 %s154, 1
        %s435 = smul.addr %s434, 8
        %s436 = scalar_lea.vmem [#allocation8], %s435
        // Predicated region
        $region53: #{tpu_custom_call.1} parent=35 // pred_check
          %p437 = pneg %p164
        $region54: #{tpu_custom_call.1} parent=35 // pred_check_branch
          %439 = sbr.rel (%p437) target = $region56
        $region55: #{tpu_custom_call.1} parent=35 // pred_region
          %s441 = ssub.s32 128, 128
          %442 = vsyncadd %s433, %s441
          %s443 = smul.addr %s33, 4
          %s444 = sadd.s32 %s32, %s443
          %s445 = smul.addr %s444, 128
          %s446 = scalar_lea.hbm %s5, %s445
          %s448 = sshll.u32 %s436, 4
          %s449 = int_to_ptr.vmem [resolvable:$true] %s448
          %451 = dma.vmem_to_hbm [thread:$0]  %s449, 128, %s446, %s433
        $region56: #{tpu_custom_call.1} parent=35 // pred_fallthru
          _
      $region36: #{tpu_custom_call.1} parent=5 // pred_fallthru
        _
      %p452 = scmp.le.s32.totalorder 2, %s23
      // Predicated region
      $region57: #{tpu_custom_call.1} parent=5 // pred_check
        %p453 = pneg %p452
      $region58: #{tpu_custom_call.1} parent=5 // pred_check_branch
        %455 = sbr.rel (%p453) target = $region60
      $region59: #{tpu_custom_call.1} parent=5 // pred_region
        %s456 = ssub.s32 %s23, 2
        // Predicated region
        $region61: #{tpu_custom_call.1} parent=59 // pred_check
          %p457 = pneg %p170
        $region62: #{tpu_custom_call.1} parent=59 // pred_check_branch
          %459 = sbr.rel (%p457) target = $region64
        $region63: #{tpu_custom_call.1} parent=59 // pred_region
          %s460 = sand.u32 %s155, 1
          %s461 = scalar_lea.sflag [#allocation7], %s460
          %s462 = sand.u32 %s155, 1
          %s463 = smul.addr %s462, 8
          %s464 = scalar_lea.vmem [#allocation8], %s463
          %465 = dma.done %s461, 128
        $region64: #{tpu_custom_call.1} parent=59 // pred_fallthru
          _
      $region60: #{tpu_custom_call.1} parent=5 // pred_fallthru
        _
    $region6: #{tpu_custom_call.1} parent=1 // loop_footer
      %s27 = sadd.s32 1, %s23
    $region7: #{tpu_custom_call.1} parent=1 // loop_footer_branch
      %22 = sbr.rel target = $region3
    $region8: #{tpu_custom_call.1} parent=1 // loop_exit
      _
    %466 = vsyncpa [#allocation6], 1
    %s467 = scalar_lea.sflag [#allocation6], 1
    %468 = vsyncpa %s467, 1
    %469 = vsyncpa [#allocation7], 1
    %s470 = scalar_lea.sflag [#allocation7], 1
    %471 = vsyncpa %s470, 1

</llo_original>
